<compile_context>
chip_gen: v7x
topology: tpu7x:2x2x1
jax: 0.10.0
libtpu: 0.0.40
codegen_flags: <defaults>
</compile_context>

<pallas_src>
import functools

import jax
import jax.numpy as jnp
from jax import lax
from jax.experimental import pallas as pl
from jax.experimental.pallas import tpu as pltpu

_LANES = 128
_SUBLANES = 8
_CHUNK_ROWS = 128                       # in-kernel sub-tile (128x128 f32 = 16 vregs)
_TARGET_STEP_BYTES = 8 * 1024 * 1024    # HBM bytes moved per grid step (both inputs)
_VMEM_LIMIT_BYTES = 32 * 1024 * 1024    # covers 2 inputs x 2 buffers x 4 MiB + slack


def _rmse_sse_kernel(yhat_ref, y_ref, out_ref, acc_ref, *,
                     n_rows, block_rows, chunk_rows, steps_per_core, ragged):
    """Accumulate sum((yhat - y)^2) over this core's row range.

    Emits one f32 SSE scalar per core into the (1,1) SMEM output block.
    """
    c = pl.program_id(0)      # core axis (size 1 unless num_cores > 1)
    i = pl.program_id(1)      # sequential reduction axis

    @pl.when(i == 0)
    def _():
        acc_ref[...] = jnp.zeros_like(acc_ref)

    n_full = block_rows // chunk_rows
    rem_rows = block_rows % chunk_rows              # static, multiple of 8
    block_row0 = (c * steps_per_core + i) * block_rows   # logical first row

    def chunk_sse(r0, crows, masked):
        # Load a (crows, 128) sub-tile, widen, square the diff, and fold it
        # down to a single (8,128) vreg of partial sums (pure VALU adds).
        a = yhat_ref[pl.ds(r0, crows), :].astype(jnp.float32)
        b = y_ref[pl.ds(r0, crows), :].astype(jnp.float32)
        d = a - b
        sq = d * d
        if masked:
            rid = (block_row0 + r0) + lax.broadcasted_iota(
                jnp.int32, (crows, _LANES), 0)
            # Keep this a select applied after squaring (NaN/Inf-safe).
            sq = jnp.where(rid < n_rows, sq, 0.0)
        return sq.reshape(-1, _SUBLANES, _LANES).sum(axis=0)

    def accumulate(masked):
        def body(ci, acc):
            r0 = pl.multiple_of(ci * chunk_rows, chunk_rows)
            return acc + chunk_sse(r0, chunk_rows, masked)

        acc = lax.fori_loop(0, n_full, body,
                            jnp.zeros((_SUBLANES, _LANES), jnp.float32))
        if rem_rows:
            acc = acc + chunk_sse(n_full * chunk_rows, rem_rows, masked)
        acc_ref[...] += acc

    if ragged:
        # Only the block(s) that straddle / exceed the real row count pay for
        # the iota+compare+select; all fully in-bounds blocks stay clean.
        needs_mask = block_row0 + block_rows > n_rows

        @pl.when(needs_mask)
        def _():
            accumulate(True)

        @pl.when(jnp.logical_not(needs_mask))
        def _():
            accumulate(False)
    else:
        accumulate(False)

    @pl.when(i == steps_per_core - 1)
    def _():
        # Fold the (8,128) partials to one scalar per core (XLU reduce) so the
        # wrapper only sums <= num_cores values and takes the sqrt.
        out_ref[0, 0] = jnp.sum(acc_ref[...])


def rmse_loss(yhat, y, eps=1e-06, *, num_cores=1, max_block_rows=None):
    """sqrt(mean((yhat - y)^2) + eps), mean over all elements (f32 result)."""
    assert yhat.shape == y.shape, "yhat and y must have the same shape"
    n_elems = int(yhat.size)
    assert n_elems > 0

    # Flatten row-major (same as torch .view(-1)); keep native dtypes in HBM.
    flat_yhat = yhat.reshape(-1)
    flat_y = y.reshape(-1)

    # ---- Layout: view the flat data as (rows, 128) -------------------------
    lane_pad = (-n_elems) % _LANES
    rows = (n_elems + lane_pad) // _LANES
    if lane_pad or rows < _SUBLANES:
        # Fallback copy ONLY for non-128-aligned element counts or tiny
        # (<1 KiB) inputs.  Identical zero padding in both inputs contributes
        # exactly 0 to the squared-diff sum.  128-aligned inputs (the common
        # case) take the zero-copy path; ragged ROW counts are handled by the
        # in-kernel mask, never by padding.
        row_pad = (-rows) % _SUBLANES
        if rows + row_pad < _SUBLANES:
            row_pad = _SUBLANES - rows
        total_pad = lane_pad + row_pad * _LANES
        flat_yhat = jnp.pad(flat_yhat, (0, total_pad))
        flat_y = jnp.pad(flat_y, (0, total_pad))
        rows += row_pad
    yhat2d = flat_yhat.reshape(rows, _LANES)
    y2d = flat_y.reshape(rows, _LANES)

    # ---- Block sizing (dtype-aware, ~8 MiB of HBM traffic per grid step) ---
    bytes_per_row = _LANES * (yhat.dtype.itemsize + y.dtype.itemsize)
    target_rows = max(_SUBLANES, _TARGET_STEP_BYTES // bytes_per_row)
    block_rows = min(rows, target_rows)
    if max_block_rows is not None:
        block_rows = min(block_rows, int(max_block_rows))
    block_rows = max(_SUBLANES, (block_rows // _SUBLANES) * _SUBLANES)

    nblocks = pl.cdiv(rows, block_rows)
    num_parallel = max(1, min(int(num_cores), nblocks))
    steps_per_core = pl.cdiv(nblocks, num_parallel)
    covered_rows = num_parallel * steps_per_core * block_rows
    ragged = covered_rows != rows          # any block extends past the data?
    chunk_rows = min(_CHUNK_ROWS, block_rows)

    kernel = functools.partial(
        _rmse_sse_kernel,
        n_rows=rows,
        block_rows=block_rows,
        chunk_rows=chunk_rows,
        steps_per_core=steps_per_core,
        ragged=ragged,
    )

    if num_parallel == 1:
        in_map = lambda c, i: (i, 0)
        dims = ("arbitrary", "arbitrary")
    else:
        # Clamp so an overhanging logical block never indexes past the array;
        # any duplicated data it reads is fully masked in-kernel.
        def in_map(c, i, spc=steps_per_core, nb=nblocks):
            return (jnp.minimum(c * spc + i, nb - 1), 0)
        dims = (pltpu.CORE_PARALLEL, pltpu.ARBITRARY)   # real 2-TC split (v7x)

    partials = pl.pallas_call(
        kernel,
        out_shape=jax.ShapeDtypeStruct((num_parallel, 1), jnp.float32),
        grid_spec=pltpu.PrefetchScalarGridSpec(
            num_scalar_prefetch=0,
            grid=(num_parallel, steps_per_core),
            in_specs=[
                pl.BlockSpec((block_rows, _LANES), in_map),
                pl.BlockSpec((block_rows, _LANES), in_map),
            ],
            out_specs=pl.BlockSpec((1, 1), lambda c, i: (c, 0),
                                   memory_space=pltpu.MemorySpace.SMEM),
            scratch_shapes=[pltpu.VMEM((_SUBLANES, _LANES), jnp.float32)],
        ),
        compiler_params=pltpu.CompilerParams(
            dimension_semantics=dims,
            vmem_limit_bytes=_VMEM_LIMIT_BYTES),
    )(yhat2d, y2d)

    sse = jnp.sum(partials)                     # <= num_cores elements
    return jnp.sqrt(sse * jnp.float32(1.0 / n_elems) + jnp.float32(eps))


def _ref_rmse(yhat, y, eps=1e-06):
    d = yhat.astype(jnp.float32) - y.astype(jnp.float32)
    return jnp.sqrt(jnp.mean(d * d) + jnp.float32(eps))


if __name__ == "__main__":
    key = jax.random.PRNGKey(0)
    k1, k2, k3, k4, k5, k6 = jax.random.split(key, 6)

    # --- Main test: small (B, C, H, W) regression output, f32 --------------
    shape = (2, 4, 16, 16)
    yhat = jax.random.normal(k1, shape, dtype=jnp.float32)
    y = jax.random.normal(k2, shape, dtype=jnp.float32)
    loss = rmse_loss(yhat, y)
    jax.block_until_ready(loss)
    ref = _ref_rmse(yhat, y)
    assert jnp.allclose(loss, ref, rtol=1e-5, atol=1e-6), (loss, ref)

    # --- bf16 inputs, non-128-aligned element count (pad-fallback path) ----
    yhat_b = jax.random.normal(k3, (4, 3, 100), dtype=jnp.bfloat16)
    y_b = jax.random.normal(k4, (4, 3, 100), dtype=jnp.bfloat16)
    loss_b = rmse_loss(yhat_b, y_b)
    ref_b = _ref_rmse(yhat_b, y_b)
    assert jnp.allclose(loss_b, ref_b, rtol=1e-4, atol=1e-6), (loss_b, ref_b)

    # --- Multi-block grid with a partial last block (exercises the
    #     pl.when masked / unmasked split and OOB-row masking) --------------
    yhat_c = jax.random.normal(k5, (40, 128), dtype=jnp.float32)
    y_c = jax.random.normal(k6, (40, 128), dtype=jnp.float32)
    loss_c = rmse_loss(yhat_c, y_c, max_block_rows=16)
    ref_c = _ref_rmse(yhat_c, y_c)
    assert jnp.allclose(loss_c, ref_c, rtol=1e-4, atol=1e-6), (loss_c, ref_c)

    print("KERNEL_OK")
</pallas_src>

<mosaic_0001>
module attributes {stable_mosaic.version = 11 : i64} {
  func.func @_rmse_sse_kernel(%arg0: i32, %arg1: i32, %arg2: memref<16x128xf32, #tpu.memory_space<vmem>>, %arg3: memref<16x128xf32, #tpu.memory_space<vmem>>, %arg4: memref<1x1xf32, #tpu.memory_space<smem>>, %arg5: memref<8x128xf32, #tpu.memory_space<vmem>>) attributes {dimension_semantics = [#tpu.dimension_semantics<arbitrary>, #tpu.dimension_semantics<arbitrary>], iteration_bounds = array<i64: 1, 1>, scalar_prefetch = 0 : i64, scratch_operands = 1 : i64, tpu.core_type = #tpu.core_type<tc>, window_params = [{transform_indices = @transform_0, window_bounds = array<i64: 16, 128>}, {transform_indices = @transform_1, window_bounds = array<i64: 16, 128>}, {transform_indices = @transform_2, window_bounds = array<i64: 1, 1>}]} {
    %c0_i32 = arith.constant 0 : i32
    %0 = arith.cmpi eq, %arg1, %c0_i32 : i32
    %1 = arith.extui %0 : i1 to i32
    %c0_i32_0 = arith.constant 0 : i32
    %2 = arith.cmpi ne, %1, %c0_i32_0 : i32
    scf.if %2 {
      %cst_10 = arith.constant 0.000000e+00 : f32
      %21 = vector.broadcast %cst_10 : f32 to vector<8x128xf32>
      %c0_11 = arith.constant 0 : index
      %c0_12 = arith.constant 0 : index
      %22 = vector.load %arg5[%c0_11, %c0_12] : memref<8x128xf32, #tpu.memory_space<vmem>>, vector<8x128xf32>
      tpu.vector_store %arg5[%c0_11, %c0_12], %21 {strides = array<i32>} : memref<8x128xf32, #tpu.memory_space<vmem>>, vector<8x128xf32>,
    } else {
    }
    %cst = arith.constant 0.000000e+00 : f32
    %3 = vector.broadcast %cst : f32 to vector<8x128xf32>
    %c0_i32_1 = arith.constant 0 : i32
    %c16_i32 = arith.constant 16 : i32
    %4 = arith.muli %c0_i32_1, %c16_i32 : i32
    %5 = tpu.assume_multiple %4, 16 : i32
    %6 = arith.index_cast %5 : i32 to index
    %c0 = arith.constant 0 : index
    %7 = vector.load %arg2[%6, %c0] : memref<16x128xf32, #tpu.memory_space<vmem>>, vector<16x128xf32>
    %8 = arith.index_cast %5 : i32 to index
    %c0_2 = arith.constant 0 : index
    %9 = vector.load %arg3[%8, %c0_2] : memref<16x128xf32, #tpu.memory_space<vmem>>, vector<16x128xf32>
    %10 = arith.subf %7, %9 : vector<16x128xf32>
    %11 = arith.mulf %10, %10 : vector<16x128xf32>
    %12 = vector.shape_cast %11 : vector<16x128xf32> to vector<2x8x128xf32>
    %cst_3 = arith.constant dense<0.000000e+00> : vector<8x128xf32>
    %13 = vector.multi_reduction <add>, %12, %cst_3 [0] : vector<2x8x128xf32> to vector<8x128xf32>
    %14 = arith.addf %3, %13 : vector<8x128xf32>
    %c1_i32 = arith.constant 1 : i32
    %c0_4 = arith.constant 0 : index
    %c0_5 = arith.constant 0 : index
    %15 = vector.load %arg5[%c0_4, %c0_5] : memref<8x128xf32, #tpu.memory_space<vmem>>, vector<8x128xf32>
    %16 = arith.addf %15, %14 : vector<8x128xf32>
    %c0_6 = arith.constant 0 : index
    %c0_7 = arith.constant 0 : index
    %17 = vector.load %arg5[%c0_6, %c0_7] : memref<8x128xf32, #tpu.memory_space<vmem>>, vector<8x128xf32>
    tpu.vector_store %arg5[%c0_6, %c0_7], %16 {strides = array<i32>} : memref<8x128xf32, #tpu.memory_space<vmem>>, vector<8x128xf32>,
    %c0_i32_8 = arith.constant 0 : i32
    %18 = arith.cmpi eq, %arg1, %c0_i32_8 : i32
    %19 = arith.extui %18 : i1 to i32
    %c0_i32_9 = arith.constant 0 : i32
    %20 = arith.cmpi ne, %19, %c0_i32_9 : i32
    scf.if %20 {
      %c0_10 = arith.constant 0 : index
      %c0_11 = arith.constant 0 : index
      %21 = vector.load %arg5[%c0_10, %c0_11] : memref<8x128xf32, #tpu.memory_space<vmem>>, vector<8x128xf32>
      %22 = vector.shape_cast %21 : vector<8x128xf32> to vector<1x8x128xf32>
      %cst_12 = arith.constant dense<0.000000e+00> : vector<1xf32>
      %23 = vector.multi_reduction <add>, %22, %cst_12 [1, 2] : vector<1x8x128xf32> to vector<1xf32>
      %24 = vector.shape_cast %23 : vector<1xf32> to vector<1x1x1xf32>
      %25 = vector.extract %24[0, 0, 0] : f32 from vector<1x1x1xf32>
      %c0_13 = arith.constant 0 : index
      %c0_14 = arith.constant 0 : index
      %26 = memref.load %arg4[%c0_13, %c0_14] : memref<1x1xf32, #tpu.memory_space<smem>>
      memref.store %25, %arg4[%c0_13, %c0_14] : memref<1x1xf32, #tpu.memory_space<smem>>
    } else {
    }
    return
  }
  func.func @transform_0(%arg0: i32, %arg1: i32) -> (i32, i32) {
    %c0_i32 = arith.constant 0 : i32
    %c0_i32_0 = arith.constant 0 : i32
    return %arg1, %c0_i32 : i32, i32
  }
  func.func @transform_1(%arg0: i32, %arg1: i32) -> (i32, i32) {
    %c0_i32 = arith.constant 0 : i32
    %c0_i32_0 = arith.constant 0 : i32
    return %arg1, %c0_i32 : i32, i32
  }
  func.func @transform_2(%arg0: i32, %arg1: i32) -> (i32, i32) {
    %c0_i32 = arith.constant 0 : i32
    %c0_i32_0 = arith.constant 0 : i32
    return %arg0, %c0_i32 : i32, i32
  }
}

</mosaic_0001>

<llo_original>
// kernel: tpu_custom_call.1
$region0: #{tpu_custom_call.1}
  #allocation0 [shape = 'u32[]', space=smem, size = 0x4, offset = 0x4, fixed_abs, tag = 'smem constant byte address 0x4 - core index']
  #allocation1 [shape = 'u32[144,128]{1,0:T(1,128)}', space=vmem, size = 0x12000, scoped, tag = 'internal scratch']
  #allocation2 [shape = 'f32[8,128]{1,0:T(8,128)}', space=vmem, size = 0x1000, scoped, tag = 'scratch operand']
  %s0 = inlined_call_operand.hbm [shape: f32[16,128], index: 0, kind: input, shape index: {}]
  %s1 = inlined_call_operand.hbm [shape: f32[16,128], index: 1, kind: input, shape index: {}]
  %s2 = inlined_call_operand.hbm [shape: f32[1,1], index: 2, kind: output, shape index: {}]
  %s3 = sld [smem:[#allocation0]]
  $region34: #{tpu_custom_call.1} parent=0
    _
  %s5 = ssub.s32 1, %s3
  %s6 = scalar_select 0, %s5, %s3
  $region1: #{tpu_custom_call.1} parent=0
    #allocation3 [shape = 'u8[8192]{0}', space=vmem, size = 0x2000, scoped, tag = 'input window, operand 0, single buffered']
    #allocation4 [shape = 's32[1]{0}', space=sflag, size = 0x4, scoped, tag = 'scoped memory for tpu_custom_call.1']
    #allocation5 [shape = 's32[1]{0}', space=sflag, size = 0x4, scoped, tag = 'scoped memory for tpu_custom_call.1']
    #allocation6 [shape = 'u8[8192]{0}', space=vmem, size = 0x2000, scoped, tag = 'input window, operand 1, single buffered']
    #allocation7 [shape = 's32[1]{0}', space=sflag, size = 0x4, scoped, tag = 'scoped memory for tpu_custom_call.1']
    #allocation8 [shape = 'u8[512]{0}', space=smem, size = 0x200, scoped, tag = 'output window, operand 0, single buffered']
    %7 = vsyncpa [#allocation4], 0
    %8 = vsyncpa [#allocation7], 0
    %9 = vsyncpa [#allocation5], 0
    // Predicated region
    $region2: #{tpu_custom_call.1} parent=1 // pred_check
      _
    $region3: #{tpu_custom_call.1} parent=1 // pred_check_branch
      %11 = sbr.rel (0) target = $region5
    $region4: #{tpu_custom_call.1} parent=1 // pred_region
      %s13 = ssub.s32 256, 256
      %14 = vsyncadd [#allocation4], %s13
      %s15 = sshll.u32 [#allocation3], 4
      %s16 = int_to_ptr.vmem [resolvable:$true] %s15
      %21 = dma.hbm_to_vmem [thread:$0]  %s0, 256, %s16, [#allocation4], 128, 128, 8
    $region5: #{tpu_custom_call.1} parent=1 // pred_fallthru
      _
    // Predicated region
    $region6: #{tpu_custom_call.1} parent=1 // pred_check
      _
    $region7: #{tpu_custom_call.1} parent=1 // pred_check_branch
      %23 = sbr.rel (0) target = $region9
    $region8: #{tpu_custom_call.1} parent=1 // pred_region
      %s25 = ssub.s32 256, 256
      %26 = vsyncadd [#allocation7], %s25
      %s27 = sshll.u32 [#allocation6], 4
      %s28 = int_to_ptr.vmem [resolvable:$true] %s27
      %33 = dma.hbm_to_vmem [thread:$0]  %s1, 256, %s28, [#allocation7], 128, 128, 8
    $region9: #{tpu_custom_call.1} parent=1 // pred_fallthru
      _
    // Predicated region
    $region10: #{tpu_custom_call.1} parent=1 // pred_check
      _
    $region11: #{tpu_custom_call.1} parent=1 // pred_check_branch
      %35 = sbr.rel (0) target = $region13
    $region12: #{tpu_custom_call.1} parent=1 // pred_region
      %36 = dma.done [#allocation4], 256
    $region13: #{tpu_custom_call.1} parent=1 // pred_fallthru
      _
    // Predicated region
    $region14: #{tpu_custom_call.1} parent=1 // pred_check
      _
    $region15: #{tpu_custom_call.1} parent=1 // pred_check_branch
      %38 = sbr.rel (0) target = $region17
    $region16: #{tpu_custom_call.1} parent=1 // pred_region
      %39 = dma.done [#allocation7], 256
    $region17: #{tpu_custom_call.1} parent=1 // pred_fallthru
      _
    %p40 = scmp.eq.s32.totalorder 0, 0
    // Predicated region
    $region18: #{tpu_custom_call.1} parent=1 // pred_check
      %p41 = pneg %p40
    $region19: #{tpu_custom_call.1} parent=1 // pred_check_branch
      %43 = sbr.rel (%p41) target = $region21
    $region20: #{tpu_custom_call.1} parent=1 // pred_region
      %44 = vst [vmem:[#allocation2] sm:$0xff] 0.0
    $region21: #{tpu_custom_call.1} parent=1 // pred_fallthru
      _
    %v45 = vld [vmem:[#allocation3] sm:$0xff]
    %v46 = vld [vmem:[#allocation3 + $0x8] sm:$0xff]
    %v47 = vld [vmem:[#allocation6] sm:$0xff]
    %v48 = vld [vmem:[#allocation6 + $0x8] sm:$0xff]
    %v49 = vsub.f32 %v45, %v47
    %v50 = vsub.f32 %v46, %v48
    %v51 = vmul.f32 %v49, %v49
    %v52 = vmul.f32 %v50, %v50
    %v53 = vadd.f32 %v51, %v52
    %v54 = vadd.f32 %v53, 0.0
    %v55 = vld [vmem:[#allocation2] sm:$0xff]
    %v56 = vadd.f32 %v55, %v54
    %57 = vst [vmem:[#allocation2] sm:$0xff] %v56
    // Predicated region
    $region22: #{tpu_custom_call.1} parent=1 // pred_check
      %p58 = pneg %p40
    $region23: #{tpu_custom_call.1} parent=1 // pred_check_branch
      %60 = sbr.rel (%p58) target = $region25
    $region24: #{tpu_custom_call.1} parent=1 // pred_region
      %v61 = vld [vmem:[#allocation2] sm:$0xff]
      %62 = vadd.xlane.f32.xlu0 %v61
      %v63 = vpop.xlane.xlu0 %62
      %v64 = vrot.slane %v63, 4
      %v65 = vadd.f32 %v63, %v64
      %v66 = vrot.slane %v65, 2
      %v67 = vadd.f32 %v65, %v66
      %v68 = vrot.slane %v67, 1
      %v69 = vadd.f32 %v67, %v68
      %s70 = vtos %v69
      %s71 = scalar_lea.smem [#allocation8], 0
      %72 = sst [smem:[%s71]] %s70
    $region25: #{tpu_custom_call.1} parent=1 // pred_fallthru
      _
    // Predicated region
    $region26: #{tpu_custom_call.1} parent=1 // pred_check
      _
    $region27: #{tpu_custom_call.1} parent=1 // pred_check_branch
      %74 = sbr.rel (0) target = $region29
    $region28: #{tpu_custom_call.1} parent=1 // pred_region
      %s76 = ssub.s32 16, 16
      %77 = vsyncadd [#allocation5], %s76
      %80 = dma.smem_to_hbm [#allocation8], 16, %s2, [#allocation5]
    $region29: #{tpu_custom_call.1} parent=1 // pred_fallthru
      _
    // Predicated region
    $region30: #{tpu_custom_call.1} parent=1 // pred_check
      _
    $region31: #{tpu_custom_call.1} parent=1 // pred_check_branch
      %82 = sbr.rel (0) target = $region33
    $region32: #{tpu_custom_call.1} parent=1 // pred_region
      %83 = dma.done [#allocation5], 16
    $region33: #{tpu_custom_call.1} parent=1 // pred_fallthru
      _
    %84 = sfence
    %85 = vsyncpa [#allocation4], 1
    %86 = vsyncpa [#allocation7], 1
    %87 = vsyncpa [#allocation5], 1

</llo_original>
